<compile_context>
chip_gen: v7x
topology: tpu7x:2x2x1
jax: 0.10.0
libtpu: 0.0.40
codegen_flags: <defaults>
</compile_context>

<pallas_src>
import jax
import jax.numpy as jnp
from jax.experimental import pallas as pl
from jax.experimental.pallas import tpu as pltpu


def _round_up(x, m):
    return ((x + m - 1) // m) * m


def _tpu_config():
    """Per-generation knobs (v7x: 2 TensorCores/chip, 64 MiB VMEM per TC)."""
    kind = ""
    try:
        kind = jax.devices()[0].device_kind.lower()
    except Exception:
        pass
    is_v7 = "v7" in kind
    vmem_limit = (48 if is_v7 else 64) * 1024 * 1024
    return is_v7, vmem_limit


def _pick_batch_tile(B, N, *, max_rows=1024, want_multi_step=False):
    """Samples per grid step; TB*N flattened rows feed the MXU each step.

    TB must divide B and be a multiple of 8 (or equal B) so every input /
    output block obeys the (8, 128) tiling rule.  On v7x we additionally
    prefer >= 2 grid steps so both TensorCores are used.
    """
    if B * N <= max_rows and not (want_multi_step and B >= 16):
        return B
    cands = [tb for tb in range(8, B + 1, 8)
             if B % tb == 0 and tb * N <= max_rows]
    if want_multi_step:
        halved = [tb for tb in cands if tb <= B // 2]
        cands = halved or cands
    if cands:
        return max(cands)
    return B      # fallback: whole batch in one step (block == full array)


# ----------------------------- Pallas kernel ------------------------------- #
def _model_kernel(x_ref, w1_ref, b1_ref, w2_ref, b2_ref, o_ref):
    # x_ref:  (TM, K)   bf16  flattened patch rows for TB samples (TM = TB*N)
    # w1_ref: (K, Dp)   bf16  patch-embed weight (VMEM-resident)
    # b1_ref: (1, Dp)   f32   patch-embed bias   (resident)
    # w2_ref: (Dp, Lp)  bf16  head weight        (resident)
    # b2_ref: (1, Lp)   f32   head bias          (resident)
    # o_ref:  (TB, Lp)  f32   logits slab for TB samples
    TM = x_ref.shape[0]
    TB = o_ref.shape[0]
    N = TM // TB
    Dp = w1_ref.shape[1]
    inv_n = jnp.float32(1.0 / N)

    # Patch embed: one large-M bf16 GEMM, f32 accumulation on the MXU.
    h = jnp.dot(x_ref[...], w1_ref[...], preferred_element_type=jnp.float32)
    h = jnp.maximum(h + b1_ref[...], 0.0)            # bias + ReLU in f32 (VPU)

    # Per-sample mean pool over the N patch rows.
    if N % 8 == 0:
        # Sublane-aligned: plain f32 reduction -- no pooling matrix, no extra
        # MXU work, no O(TB^2*N) resident buffer.
        pooled_sum = jnp.sum(h.reshape(TB, N, Dp), axis=1)
    else:
        # Fallback (e.g. N=196): block-diagonal selection built in-kernel from
        # iota; the sum happens in a single bf16 GEMM pass.
        sid = jax.lax.broadcasted_iota(jnp.int32, (TB, TM), 1) // N
        tid = jax.lax.broadcasted_iota(jnp.int32, (TB, TM), 0)
        sel = (sid == tid).astype(jnp.bfloat16)
        pooled_sum = jnp.dot(sel, h.astype(jnp.bfloat16),
                             preferred_element_type=jnp.float32)
    # 1/N applied in f32 on the VPU (unbiased even when N isn't a power of 2).
    pooled = (pooled_sum * inv_n).astype(jnp.bfloat16)      # (TB, Dp)

    # Head: single-pass bf16 GEMM + f32 bias; one lane-dense (TB, Lp) store.
    logits = jnp.dot(pooled, w2_ref[...],
                     preferred_element_type=jnp.float32) + b2_ref[...]
    o_ref[...] = logits.astype(o_ref.dtype)


def model_wrapper_forward(pixel_values, params, patch_size):
    """Equivalent of ModelWrapper.forward(pixel_values) -> logits."""
    w1, b1, w2, b2 = params
    B, C, H, W = pixel_values.shape
    P = patch_size
    assert H % P == 0 and W % P == 0
    nh, nw = H // P, W // P
    N = nh * nw
    K = C * P * P
    D = w1.shape[1]
    L = w2.shape[1]

    # Lane-align the output feature dims (dense vregs / unmasked stores).
    Dp = _round_up(D, 128)
    Lp = _round_up(L, 128)

    is_v7, vmem_limit = _tpu_config()
    TB = _pick_batch_tile(B, N, max_rows=1024, want_multi_step=is_v7)
    TM = TB * N
    assert B % TB == 0
    grid = (B // TB,)

    # Patch extraction glue: cast to bf16 first so the single materialized
    # copy and the HBM->VMEM DMA are half the bytes; K is left un-padded so
    # there is no second pad copy (the kernel block spans the full K extent).
    # TODO(synk): gather patches straight from the NCHW array via the BlockSpec
    # index_map to remove this remaining HBM round-trip at large image sizes.
    x = pixel_values.astype(jnp.bfloat16)
    x = x.reshape(B, C, nh, P, nw, P)
    x = jnp.transpose(x, (0, 2, 4, 1, 3, 5)).reshape(B * N, K)     # (B*N, K)

    w1p = jnp.pad(w1.astype(jnp.bfloat16), ((0, 0), (0, Dp - D)))
    b1p = jnp.pad(b1.astype(jnp.float32).reshape(1, D), ((0, 0), (0, Dp - D)))
    w2p = jnp.pad(w2.astype(jnp.bfloat16), ((0, Dp - D), (0, Lp - L)))
    b2p = jnp.pad(b2.astype(jnp.float32).reshape(1, L), ((0, 0), (0, Lp - L)))

    # TODO(synk): on v7x, consider pipeline_mode=pl.Buffered(1) on the
    # constant-index_map weight specs to avoid double-buffering residents.
    out = pl.pallas_call(
        _model_kernel,
        out_shape=jax.ShapeDtypeStruct((B, Lp), jnp.float32),
        grid_spec=pltpu.PrefetchScalarGridSpec(
            num_scalar_prefetch=0,
            grid=grid,
            in_specs=[
                pl.BlockSpec((TM, K), lambda i: (i, 0)),     # activation tile
                pl.BlockSpec((K, Dp), lambda i: (0, 0)),     # resident weights
                pl.BlockSpec((1, Dp), lambda i: (0, 0)),
                pl.BlockSpec((Dp, Lp), lambda i: (0, 0)),
                pl.BlockSpec((1, Lp), lambda i: (0, 0)),
            ],
            out_specs=pl.BlockSpec((TB, Lp), lambda i: (i, 0)),
        ),
        compiler_params=pltpu.CompilerParams(
            dimension_semantics=("parallel",),
            vmem_limit_bytes=vmem_limit,
        ),
    )(x, w1p, b1p, w2p, b2p)
    return out[:, :L]      # [B, L] logits


# ------------------------------- reference --------------------------------- #
def reference_forward(pixel_values, params, patch_size):
    w1, b1, w2, b2 = params
    B, C, H, W = pixel_values.shape
    P = patch_size
    nh, nw = H // P, W // P
    x = pixel_values.reshape(B, C, nh, P, nw, P)
    x = jnp.transpose(x, (0, 2, 4, 1, 3, 5)).reshape(B, nh * nw, C * P * P)
    h = jnp.maximum(x.astype(jnp.float32) @ w1 + b1, 0.0)
    pooled = jnp.mean(h, axis=1)
    return pooled @ w2 + b2


if __name__ == "__main__":
    # TODO(synk): inner `model` architecture is not defined in the wrapper;
    # using a deterministic synthetic patch-embed + pooled linear head whose
    # output plays the role of outputs['logits'].
    B, C, H, W = 2, 4, 16, 16
    P = 4                      # patch size
    D = 32                     # hidden dim
    L = 8                      # number of logits
    K = C * P * P

    key = jax.random.PRNGKey(0)
    k_x, k_w1, k_b1, k_w2, k_b2 = jax.random.split(key, 5)
    pixel_values = jax.random.normal(k_x, (B, C, H, W), dtype=jnp.float32)
    w1 = jax.random.normal(k_w1, (K, D), dtype=jnp.float32) * 0.05
    b1 = jax.random.normal(k_b1, (D,), dtype=jnp.float32) * 0.01
    w2 = jax.random.normal(k_w2, (D, L), dtype=jnp.float32) * 0.05
    b2 = jax.random.normal(k_b2, (L,), dtype=jnp.float32) * 0.01
    params = (w1, b1, w2, b2)

    logits = model_wrapper_forward(pixel_values, params, P)
    logits = jax.block_until_ready(logits)

    ref = reference_forward(pixel_values, params, P)
    assert logits.shape == (B, L)
    # bf16 operands on all GEMMs -> loosened tolerance vs the f32 reference.
    assert jnp.allclose(logits, ref, atol=2e-2, rtol=2e-2)
    print("KERNEL_OK")
</pallas_src>

<mosaic_0001>
module attributes {stable_mosaic.version = 11 : i64} {
  func.func @_model_kernel(%arg0: i32, %arg1: memref<32x64xbf16, #tpu.memory_space<vmem>>, %arg2: memref<64x128xbf16, #tpu.memory_space<vmem>>, %arg3: memref<1x128xf32, #tpu.memory_space<vmem>>, %arg4: memref<128x128xbf16, #tpu.memory_space<vmem>>, %arg5: memref<1x128xf32, #tpu.memory_space<vmem>>, %arg6: memref<2x128xf32, #tpu.memory_space<vmem>>) attributes {dimension_semantics = [#tpu.dimension_semantics<parallel>], iteration_bounds = array<i64: 1>, scalar_prefetch = 0 : i64, scratch_operands = 0 : i64, tpu.core_type = #tpu.core_type<tc>, window_params = [{transform_indices = @transform_0, window_bounds = array<i64: 32, 64>}, {pipeline_mode = #tpu.pipeline_mode<synchronous>, transform_indices = @transform_1, window_bounds = array<i64: 64, 128>}, {pipeline_mode = #tpu.pipeline_mode<synchronous>, transform_indices = @transform_2, window_bounds = array<i64: 1, 128>}, {pipeline_mode = #tpu.pipeline_mode<synchronous>, transform_indices = @transform_3, window_bounds = array<i64: 128, 128>}, {pipeline_mode = #tpu.pipeline_mode<synchronous>, transform_indices = @transform_4, window_bounds = array<i64: 1, 128>}, {transform_indices = @transform_5, window_bounds = array<i64: 2, 128>}]} {
    %c0 = arith.constant 0 : index
    %c0_0 = arith.constant 0 : index
    %0 = vector.load %arg1[%c0, %c0_0] : memref<32x64xbf16, #tpu.memory_space<vmem>>, vector<32x64xbf16>
    %c0_1 = arith.constant 0 : index
    %c0_2 = arith.constant 0 : index
    %1 = vector.load %arg2[%c0_1, %c0_2] : memref<64x128xbf16, #tpu.memory_space<vmem>>, vector<64x128xbf16>
    %cst = arith.constant dense<0.000000e+00> : vector<32x128xf32>
    %2 = tpu.matmul %0, %1, %cst {dimension_numbers = #tpu.dot_dimension_numbers<[1], [0], [0], [1], [0, 0, 1, 1], [], []>} : vector<32x64xbf16>, vector<64x128xbf16>, vector<32x128xf32> -> vector<32x128xf32>
    %c0_3 = arith.constant 0 : index
    %c0_4 = arith.constant 0 : index
    %3 = vector.load %arg3[%c0_3, %c0_4] : memref<1x128xf32, #tpu.memory_space<vmem>>, vector<1x128xf32>
    %4 = vector.broadcast %3 : vector<1x128xf32> to vector<32x128xf32>
    %5 = arith.addf %2, %4 : vector<32x128xf32>
    %cst_5 = arith.constant 0.000000e+00 : f32
    %6 = vector.broadcast %cst_5 : f32 to vector<32x128xf32>
    %7 = arith.maximumf %5, %6 : vector<32x128xf32>
    %8 = vector.shape_cast %7 : vector<32x128xf32> to vector<2x16x128xf32>
    %cst_6 = arith.constant dense<0.000000e+00> : vector<2x128xf32>
    %9 = vector.multi_reduction <add>, %8, %cst_6 [1] : vector<2x16x128xf32> to vector<2x128xf32>
    %cst_7 = arith.constant 6.250000e-02 : f32
    %10 = vector.broadcast %cst_7 : f32 to vector<2x128xf32>
    %11 = arith.mulf %9, %10 : vector<2x128xf32>
    %12 = arith.truncf %11 : vector<2x128xf32> to vector<2x128xbf16>
    %c0_8 = arith.constant 0 : index
    %c0_9 = arith.constant 0 : index
    %13 = vector.load %arg4[%c0_8, %c0_9] : memref<128x128xbf16, #tpu.memory_space<vmem>>, vector<128x128xbf16>
    %cst_10 = arith.constant dense<0.000000e+00> : vector<2x128xf32>
    %14 = tpu.matmul %12, %13, %cst_10 {dimension_numbers = #tpu.dot_dimension_numbers<[1], [0], [0], [1], [0, 0, 1, 1], [], []>} : vector<2x128xbf16>, vector<128x128xbf16>, vector<2x128xf32> -> vector<2x128xf32>
    %c0_11 = arith.constant 0 : index
    %c0_12 = arith.constant 0 : index
    %15 = vector.load %arg5[%c0_11, %c0_12] : memref<1x128xf32, #tpu.memory_space<vmem>>, vector<1x128xf32>
    %16 = vector.broadcast %15 : vector<1x128xf32> to vector<2x128xf32>
    %17 = arith.addf %14, %16 : vector<2x128xf32>
    %c0_13 = arith.constant 0 : index
    %c0_14 = arith.constant 0 : index
    %18 = vector.load %arg6[%c0_13, %c0_14] : memref<2x128xf32, #tpu.memory_space<vmem>>, vector<2x128xf32>
    tpu.vector_store %arg6[%c0_13, %c0_14], %17 {strides = array<i32>} : memref<2x128xf32, #tpu.memory_space<vmem>>, vector<2x128xf32>,
    return
  }
  func.func @transform_0(%arg0: i32) -> (i32, i32) {
    %c0_i32 = arith.constant 0 : i32
    %c0_i32_0 = arith.constant 0 : i32
    return %arg0, %c0_i32 : i32, i32
  }
  func.func @transform_1(%arg0: i32) -> (i32, i32) {
    %c0_i32 = arith.constant 0 : i32
    %c0_i32_0 = arith.constant 0 : i32
    %c0_i32_1 = arith.constant 0 : i32
    return %c0_i32, %c0_i32_0 : i32, i32
  }
  func.func @transform_2(%arg0: i32) -> (i32, i32) {
    %c0_i32 = arith.constant 0 : i32
    %c0_i32_0 = arith.constant 0 : i32
    %c0_i32_1 = arith.constant 0 : i32
    return %c0_i32, %c0_i32_0 : i32, i32
  }
  func.func @transform_3(%arg0: i32) -> (i32, i32) {
    %c0_i32 = arith.constant 0 : i32
    %c0_i32_0 = arith.constant 0 : i32
    %c0_i32_1 = arith.constant 0 : i32
    return %c0_i32, %c0_i32_0 : i32, i32
  }
  func.func @transform_4(%arg0: i32) -> (i32, i32) {
    %c0_i32 = arith.constant 0 : i32
    %c0_i32_0 = arith.constant 0 : i32
    %c0_i32_1 = arith.constant 0 : i32
    return %c0_i32, %c0_i32_0 : i32, i32
  }
  func.func @transform_5(%arg0: i32) -> (i32, i32) {
    %c0_i32 = arith.constant 0 : i32
    %c0_i32_0 = arith.constant 0 : i32
    return %arg0, %c0_i32 : i32, i32
  }
}

</mosaic_0001>

<llo_original>
// kernel: tpu_custom_call.1
$region0: #{tpu_custom_call.1}
  #allocation0 [shape = 'u32[]', space=smem, size = 0x4, offset = 0x4, fixed_abs, tag = 'smem constant byte address 0x4 - core index']
  #allocation1 [shape = 'u32[144,128]{1,0:T(1,128)}', space=vmem, size = 0x12000, scoped, tag = 'internal scratch']
  %s0 = inlined_call_operand.hbm [shape: bf16[32,64], index: 0, kind: input, shape index: {}]
  %s1 = inlined_call_operand.hbm [shape: bf16[64,128], index: 1, kind: input, shape index: {}]
  %s2 = inlined_call_operand.hbm [shape: f32[1,128], index: 2, kind: input, shape index: {}]
  %s3 = inlined_call_operand.hbm [shape: bf16[128,128], index: 3, kind: input, shape index: {}]
  %s4 = inlined_call_operand.hbm [shape: f32[1,128], index: 4, kind: input, shape index: {}]
  %s5 = inlined_call_operand.hbm [shape: f32[2,128], index: 5, kind: output, shape index: {}]
  %s6 = sld [smem:[#allocation0]]
  $region50: #{tpu_custom_call.1} parent=0
    _
  %s8 = ssub.s32 1, %s6
  %s9 = scalar_select 0, %s8, %s6
  $region1: #{tpu_custom_call.1} parent=0
    #allocation2 [shape = 'u8[8192]{0}', space=vmem, size = 0x2000, scoped, tag = 'input window, operand 0, single buffered']
    #allocation3 [shape = 's32[1]{0}', space=sflag, size = 0x4, scoped, tag = 'scoped memory for tpu_custom_call.1']
    #allocation4 [shape = 's32[1]{0}', space=sflag, size = 0x4, scoped, tag = 'scoped memory for tpu_custom_call.1']
    #allocation5 [shape = 'u8[16384]{0}', space=vmem, size = 0x4000, scoped, tag = 'input window, operand 1, single buffered']
    #allocation6 [shape = 's32[1]{0}', space=sflag, size = 0x4, scoped, tag = 'scoped memory for tpu_custom_call.1']
    #allocation7 [shape = 'u8[512]{0}', space=vmem, size = 0x400, scoped, tag = 'input window, operand 2, single buffered']
    #allocation8 [shape = 'u8[32768]{0}', space=vmem, size = 0x8000, scoped, tag = 'input window, operand 3, single buffered']
    #allocation9 [shape = 's32[1]{0}', space=sflag, size = 0x4, scoped, tag = 'scoped memory for tpu_custom_call.1']
    #allocation10 [shape = 'u8[512]{0}', space=vmem, size = 0x400, scoped, tag = 'input window, operand 4, single buffered']
    #allocation11 [shape = 'u8[1024]{0}', space=vmem, size = 0x400, scoped, tag = 'output window, operand 0, single buffered']
    %10 = vsyncpa [#allocation3], 0
    %11 = vsyncpa [#allocation6], 0
    %12 = vsyncpa [#allocation9], 0
    %13 = vsyncpa [#allocation4], 0
    // Predicated region
    $region2: #{tpu_custom_call.1} parent=1 // pred_check
      _
    $region3: #{tpu_custom_call.1} parent=1 // pred_check_branch
      %15 = sbr.rel (0) target = $region5
    $region4: #{tpu_custom_call.1} parent=1 // pred_region
      %s17 = ssub.s32 256, 256
      %18 = vsyncadd [#allocation3], %s17
      %s19 = sshll.u32 [#allocation2], 4
      %s20 = int_to_ptr.vmem [resolvable:$true] %s19
      %25 = dma.hbm_to_vmem [thread:$0]  %s0, 256, %s20, [#allocation3], 64, 64, 4
    $region5: #{tpu_custom_call.1} parent=1 // pred_fallthru
      _
    // Predicated region
    $region6: #{tpu_custom_call.1} parent=1 // pred_check
      _
    $region7: #{tpu_custom_call.1} parent=1 // pred_check_branch
      %27 = sbr.rel (0) target = $region9
    $region8: #{tpu_custom_call.1} parent=1 // pred_region
      %s29 = ssub.s32 512, 512
      %30 = vsyncadd [#allocation6], %s29
      %s31 = sshll.u32 [#allocation5], 4
      %s32 = int_to_ptr.vmem [resolvable:$true] %s31
      %37 = dma.hbm_to_vmem [thread:$0]  %s1, 512, %s32, [#allocation6], 64, 64, 4
    $region9: #{tpu_custom_call.1} parent=1 // pred_fallthru
      _
    // Predicated region
    $region10: #{tpu_custom_call.1} parent=1 // pred_check
      _
    $region11: #{tpu_custom_call.1} parent=1 // pred_check_branch
      %39 = sbr.rel (0) target = $region13
    $region12: #{tpu_custom_call.1} parent=1 // pred_region
      %s41 = ssub.s32 16, 16
      %42 = vsyncadd [#allocation6], %s41
      %s44 = sshll.u32 [#allocation7], 4
      %s45 = int_to_ptr.vmem [resolvable:$true] %s44
      %47 = dma.hbm_to_vmem [thread:$0]  %s2, 16, %s45, [#allocation6]
    $region13: #{tpu_custom_call.1} parent=1 // pred_fallthru
      _
    // Predicated region
    $region14: #{tpu_custom_call.1} parent=1 // pred_check
      _
    $region15: #{tpu_custom_call.1} parent=1 // pred_check_branch
      %49 = sbr.rel (0) target = $region17
    $region16: #{tpu_custom_call.1} parent=1 // pred_region
      %s51 = ssub.s32 1024, 1024
      %52 = vsyncadd [#allocation9], %s51
      %s53 = sshll.u32 [#allocation8], 4
      %s54 = int_to_ptr.vmem [resolvable:$true] %s53
      %59 = dma.hbm_to_vmem [thread:$0]  %s3, 1024, %s54, [#allocation9], 64, 64, 4
    $region17: #{tpu_custom_call.1} parent=1 // pred_fallthru
      _
    // Predicated region
    $region18: #{tpu_custom_call.1} parent=1 // pred_check
      _
    $region19: #{tpu_custom_call.1} parent=1 // pred_check_branch
      %61 = sbr.rel (0) target = $region21
    $region20: #{tpu_custom_call.1} parent=1 // pred_region
      %s63 = ssub.s32 16, 16
      %64 = vsyncadd [#allocation9], %s63
      %s66 = sshll.u32 [#allocation10], 4
      %s67 = int_to_ptr.vmem [resolvable:$true] %s66
      %69 = dma.hbm_to_vmem [thread:$0]  %s4, 16, %s67, [#allocation9]
    $region21: #{tpu_custom_call.1} parent=1 // pred_fallthru
      _
    // Predicated region
    $region22: #{tpu_custom_call.1} parent=1 // pred_check
      _
    $region23: #{tpu_custom_call.1} parent=1 // pred_check_branch
      %71 = sbr.rel (0) target = $region25
    $region24: #{tpu_custom_call.1} parent=1 // pred_region
      %72 = dma.done [#allocation3], 256
    $region25: #{tpu_custom_call.1} parent=1 // pred_fallthru
      _
    // Predicated region
    $region26: #{tpu_custom_call.1} parent=1 // pred_check
      _
    $region27: #{tpu_custom_call.1} parent=1 // pred_check_branch
      %74 = sbr.rel (0) target = $region29
    $region28: #{tpu_custom_call.1} parent=1 // pred_region
      %75 = dma.done [#allocation6], 512
    $region29: #{tpu_custom_call.1} parent=1 // pred_fallthru
      _
    // Predicated region
    $region30: #{tpu_custom_call.1} parent=1 // pred_check
      _
    $region31: #{tpu_custom_call.1} parent=1 // pred_check_branch
      %77 = sbr.rel (0) target = $region33
    $region32: #{tpu_custom_call.1} parent=1 // pred_region
      %78 = dma.done [#allocation6], 16
    $region33: #{tpu_custom_call.1} parent=1 // pred_fallthru
      _
    // Predicated region
    $region34: #{tpu_custom_call.1} parent=1 // pred_check
      _
    $region35: #{tpu_custom_call.1} parent=1 // pred_check_branch
      %80 = sbr.rel (0) target = $region37
    $region36: #{tpu_custom_call.1} parent=1 // pred_region
      %81 = dma.done [#allocation9], 1024
    $region37: #{tpu_custom_call.1} parent=1 // pred_fallthru
      _
    // Predicated region
    $region38: #{tpu_custom_call.1} parent=1 // pred_check
      _
    $region39: #{tpu_custom_call.1} parent=1 // pred_check_branch
      %83 = sbr.rel (0) target = $region41
    $region40: #{tpu_custom_call.1} parent=1 // pred_region
      %84 = dma.done [#allocation9], 16
    $region41: #{tpu_custom_call.1} parent=1 // pred_fallthru
      _
    %v86 = vld [vmem:[#allocation2] sm:$0xf]
    %v87 = vld [vmem:[#allocation2 + $0x4] sm:$0xf]
    %v88 = vld [vmem:[#allocation2 + $0x8] sm:$0xf]
    %v89 = vld [vmem:[#allocation2 + $0xc] sm:$0xf]
    %v90 = vld [vmem:[#allocation5] sm:$0xf]
    %v91 = vld [vmem:[#allocation5 + $0x4] sm:$0xf]
    %v92 = vld [vmem:[#allocation5 + $0x8] sm:$0xf]
    %v93 = vld [vmem:[#allocation5 + $0xc] sm:$0xf]
    %v94 = vld [vmem:[#allocation5 + $0x10] sm:$0xf]
    %v95 = vld [vmem:[#allocation5 + $0x14] sm:$0xf]
    %v96 = vld [vmem:[#allocation5 + $0x18] sm:$0xf]
    %v97 = vld [vmem:[#allocation5 + $0x1c] sm:$0xf]
    %v98 = vld [vmem:[#allocation7] sm:$0x1]
    %v100 = vlaneseq
    %v101 = vshrl.u32 %v100, 7
    %v102 = vsub.s32 0, %v101
    %v103 = vrot.slane %v98, %v102
    %v109 = vunpack.c.l.b16 %v86
    %v110 = vunpack.c.l.b16 %v87
    %v111 = vunpack.c.l.b16 %v88
    %v112 = vunpack.c.l.b16 %v89
    %v113 = vpack.c.b16 %v110, %v109
    %v114 = vpack.c.b16 %v112, %v111
    %v123 = vunpack.c.l.b16 %v90
    %v124 = vunpack.c.l.b16 %v91
    %v125 = vunpack.c.l.b16 %v92
    %v126 = vunpack.c.l.b16 %v93
    %v127 = vunpack.c.l.b16 %v94
    %v128 = vunpack.c.l.b16 %v95
    %v129 = vunpack.c.l.b16 %v96
    %v130 = vunpack.c.l.b16 %v97
    %v131 = vpack.c.b16 %v124, %v123
    %v132 = vpack.c.b16 %v126, %v125
    %v133 = vpack.c.b16 %v128, %v127
    %v134 = vpack.c.b16 %v130, %v129
    %vm139 = vcmask 523264
    %v141 = vsel %vm139, %v113, 0
    %v144 = vsel %vm139, %v114, 0
    %146 = vmatprep.subr.bf16.mxu0 0
    %147 = vmatpush1.bf16.msra.mxu0 %v131
    %148 = vmatprep.subr.bf16.mxu0 0
    %149 = vmatpush1.bf16.msra.mxu0 %v132
    %150 = vmatprep.subr.bf16.mxu0 0
    %151 = vmatpush1.bf16.msra.mxu0 %v133
    %152 = vmatprep.subr.bf16.mxu0 0
    %153 = vmatpush1.bf16.msra.mxu0 %v134
    %154 = vmatprep.subr.bf16.mxu0 0
    %155 = vmatpush1.bf16.msra.mxu0 0
    %156 = vmatprep.subr.bf16.mxu0 0
    %157 = vmatpush1.bf16.msra.mxu0 0
    %158 = vmatprep.subr.bf16.mxu0 0
    %159 = vmatpush1.bf16.msra.mxu0 0
    %160 = vmatprep.subr.bf16.mxu0 0
    %161 = vmatpush1.bf16.msra.mxu0 0
    %162 = vmatprep.subr.bf16.mxu0 0
    %163 = vmatpush1.bf16.msra.mxu0 0
    %164 = vmatprep.subr.bf16.mxu0 0
    %165 = vmatpush1.bf16.msra.mxu0 0
    %166 = vmatprep.subr.bf16.mxu0 0
    %167 = vmatpush1.bf16.msra.mxu0 0
    %168 = vmatprep.subr.bf16.mxu0 0
    %169 = vmatpush1.bf16.msra.mxu0 0
    %170 = vmatprep.subr.bf16.mxu0 0
    %171 = vmatpush1.bf16.msra.mxu0 0
    %172 = vmatprep.subr.bf16.mxu0 0
    %173 = vmatpush1.bf16.msra.mxu0 0
    %174 = vmatprep.subr.bf16.mxu0 0
    %175 = vmatpush1.bf16.msra.mxu0 0
    %176 = vmatprep.subr.bf16.mxu0 0
    %177 = vmatpush1.bf16.msra.mxu0 0
    %178 = vmatprep.mubr.bf16.mxu0 0
    %179 = vmatmul.mubr.bf16.gmra.mrb[0].mxu0 %v141
    %v180 = vpop.f32.mrb[0].mxu0
    %v181 = vadd.f32 %v103, %v180
    %v182 = vpop.f32.mrb[0].mxu0
    %v183 = vpop.f32.mrb[0].mxu0
    %v184 = vadd.f32 %v103, %v183
    %v185 = vpop.f32.mrb[0].mxu0
    %186 = vmatprep.mubr.bf16.mxu0 0
    %187 = vmatmul.mubr.bf16.gmra.mrb[0].mxu0 %v144
    %v188 = vpop.f32.mrb[0].mxu0
    %v189 = vadd.f32 %v103, %v188
    %v190 = vpop.f32.mrb[0].mxu0
    %v191 = vpop.f32.mrb[0].mxu0
    %v192 = vadd.f32 %v103, %v191
    %v193 = vpop.f32.mrb[0].mxu0
    %194 = vdwg.mxu0
    %v195 = vmax.f32 %v181, 0.0
    %v196 = vmax.f32 %v184, 0.0
    %v197 = vmax.f32 %v189, 0.0
    %v198 = vmax.f32 %v192, 0.0
    %v199 = vadd.f32 %v195, %v196
    %v200 = vrot.slane %v199, 4
    %v201 = vadd.f32 %v199, %v200
    %v202 = vrot.slane %v201, 2
    %v203 = vadd.f32 %v201, %v202
    %v204 = vrot.slane %v203, 1
    %v205 = vadd.f32 %v203, %v204
    %v206 = vadd.f32 %v197, %v198
    %v207 = vrot.slane %v206, 4
    %v208 = vadd.f32 %v206, %v207
    %v209 = vrot.slane %v208, 2
    %v210 = vadd.f32 %v208, %v209
    %v211 = vrot.slane %v210, 1
    %v212 = vadd.f32 %v210, %v211
    %v213 = vmul.f32 %v205, 0.0625
    %v214 = vmul.f32 %v212, 0.0625
    %v215 = vpack.c.bf16 %v213, %v213
    %v216 = vpack.c.bf16 %v214, %v214
    %v217 = vld [vmem:[#allocation8] sm:$0xf]
    %v218 = vld [vmem:[#allocation8 + $0x4] sm:$0xf]
    %v219 = vld [vmem:[#allocation8 + $0x8] sm:$0xf]
    %v220 = vld [vmem:[#allocation8 + $0xc] sm:$0xf]
    %v221 = vld [vmem:[#allocation8 + $0x10] sm:$0xf]
    %v222 = vld [vmem:[#allocation8 + $0x14] sm:$0xf]
    %v223 = vld [vmem:[#allocation8 + $0x18] sm:$0xf]
    %v224 = vld [vmem:[#allocation8 + $0x1c] sm:$0xf]
    %v225 = vld [vmem:[#allocation8 + $0x20] sm:$0xf]
    %v226 = vld [vmem:[#allocation8 + $0x24] sm:$0xf]
    %v227 = vld [vmem:[#allocation8 + $0x28] sm:$0xf]
    %v228 = vld [vmem:[#allocation8 + $0x2c] sm:$0xf]
    %v229 = vld [vmem:[#allocation8 + $0x30] sm:$0xf]
    %v230 = vld [vmem:[#allocation8 + $0x34] sm:$0xf]
    %v231 = vld [vmem:[#allocation8 + $0x38] sm:$0xf]
    %v232 = vld [vmem:[#allocation8 + $0x3c] sm:$0xf]
    %v233 = vld [vmem:[#allocation10] sm:$0x1]
    %v235 = vlaneseq
    %v236 = vshrl.u32 %v235, 7
    %v237 = vsub.s32 0, %v236
    %v238 = vrot.slane %v233, %v237
    %v242 = vunpack.c.l.b16 %v215
    %v243 = vunpack.c.l.b16 %v216
    %vm244 = vcmask 1041409
    %v245 = vsel %vm244, %v243, %v242
    %v246 = vpack.c.b16 %v245, %v245
    %v264 = vunpack.c.l.b16 %v217
    %v265 = vunpack.c.l.b16 %v218
    %v266 = vunpack.c.l.b16 %v219
    %v267 = vunpack.c.l.b16 %v220
    %v268 = vunpack.c.l.b16 %v221
    %v269 = vunpack.c.l.b16 %v222
    %v270 = vunpack.c.l.b16 %v223
    %v271 = vunpack.c.l.b16 %v224
    %v272 = vunpack.c.l.b16 %v225
    %v273 = vunpack.c.l.b16 %v226
    %v274 = vunpack.c.l.b16 %v227
    %v275 = vunpack.c.l.b16 %v228
    %v276 = vunpack.c.l.b16 %v229
    %v277 = vunpack.c.l.b16 %v230
    %v278 = vunpack.c.l.b16 %v231
    %v279 = vunpack.c.l.b16 %v232
    %v280 = vpack.c.b16 %v265, %v264
    %v281 = vpack.c.b16 %v267, %v266
    %v282 = vpack.c.b16 %v269, %v268
    %v283 = vpack.c.b16 %v271, %v270
    %v284 = vpack.c.b16 %v273, %v272
    %v285 = vpack.c.b16 %v275, %v274
    %v286 = vpack.c.b16 %v277, %v276
    %v287 = vpack.c.b16 %v279, %v278
    %296 = vmatprep.subr.bf16.mxu0 0
    %297 = vmatpush1.bf16.msra.mxu0 %v280
    %298 = vmatprep.subr.bf16.mxu0 0
    %299 = vmatpush1.bf16.msra.mxu0 %v281
    %300 = vmatprep.subr.bf16.mxu0 0
    %301 = vmatpush1.bf16.msra.mxu0 %v282
    %302 = vmatprep.subr.bf16.mxu0 0
    %303 = vmatpush1.bf16.msra.mxu0 %v283
    %304 = vmatprep.subr.bf16.mxu0 0
    %305 = vmatpush1.bf16.msra.mxu0 %v284
    %306 = vmatprep.subr.bf16.mxu0 0
    %307 = vmatpush1.bf16.msra.mxu0 %v285
    %308 = vmatprep.subr.bf16.mxu0 0
    %309 = vmatpush1.bf16.msra.mxu0 %v286
    %310 = vmatprep.subr.bf16.mxu0 0
    %311 = vmatpush1.bf16.msra.mxu0 %v287
    %312 = vmatprep.subr.bf16.mxu0 0
    %313 = vmatpush1.bf16.msra.mxu0 0
    %314 = vmatprep.subr.bf16.mxu0 0
    %315 = vmatpush1.bf16.msra.mxu0 0
    %316 = vmatprep.subr.bf16.mxu0 0
    %317 = vmatpush1.bf16.msra.mxu0 0
    %318 = vmatprep.subr.bf16.mxu0 0
    %319 = vmatpush1.bf16.msra.mxu0 0
    %320 = vmatprep.subr.bf16.mxu0 0
    %321 = vmatpush1.bf16.msra.mxu0 0
    %322 = vmatprep.subr.bf16.mxu0 0
    %323 = vmatpush1.bf16.msra.mxu0 0
    %324 = vmatprep.subr.bf16.mxu0 0
    %325 = vmatpush1.bf16.msra.mxu0 0
    %326 = vmatprep.subr.bf16.mxu0 0
    %327 = vmatpush1.bf16.msra.mxu0 0
    %328 = vmatprep.mubr.bf16.mxu0 0
    %329 = vmatmul.mubr.bf16.gmra.mrb[0].mxu0 %v246
    %v330 = vpop.f32.mrb[0].mxu0
    %v331 = vadd.f32 %v238, %v330
    %v332 = vpop.f32.mrb[0].mxu0
    %v333 = vpop.f32.mrb[0].mxu0
    %v334 = vpop.f32.mrb[0].mxu0
    %335 = vdwg.mxu0
    %336 = vst [vmem:[#allocation11] sm:$0x3] %v331
    // Predicated region
    $region42: #{tpu_custom_call.1} parent=1 // pred_check
      _
    $region43: #{tpu_custom_call.1} parent=1 // pred_check_branch
      %338 = sbr.rel (0) target = $region45
    $region44: #{tpu_custom_call.1} parent=1 // pred_region
      %s340 = ssub.s32 32, 32
      %341 = vsyncadd [#allocation4], %s340
      %s343 = sshll.u32 [#allocation11], 4
      %s344 = int_to_ptr.vmem [resolvable:$true] %s343
      %346 = dma.vmem_to_hbm [thread:$0]  %s344, 32, %s5, [#allocation4]
    $region45: #{tpu_custom_call.1} parent=1 // pred_fallthru
      _
    // Predicated region
    $region46: #{tpu_custom_call.1} parent=1 // pred_check
      _
    $region47: #{tpu_custom_call.1} parent=1 // pred_check_branch
      %348 = sbr.rel (0) target = $region49
    $region48: #{tpu_custom_call.1} parent=1 // pred_region
      %349 = dma.done [#allocation4], 32
    $region49: #{tpu_custom_call.1} parent=1 // pred_fallthru
      _
    %350 = vsyncpa [#allocation3], 1
    %351 = vsyncpa [#allocation6], 1
    %352 = vsyncpa [#allocation9], 1
    %353 = vsyncpa [#allocation4], 1

</llo_original>
